<compile_context>
chip_gen: v7x
topology: tpu7x:2x2x1
jax: 0.10.0
libtpu: 0.0.40
codegen_flags: <defaults>
</compile_context>

<pallas_src>
import functools

import jax
import jax.numpy as jnp
from jax.experimental import pallas as pl
from jax.experimental.pallas import tpu as pltpu


def _round_up(n, m):
    return ((n + m - 1) // m) * m


def _cdiv(a, b):
    return (a + b - 1) // b


def _pad2d(a, rows, cols):
    r, c = a.shape
    if r == rows and c == cols:
        return a
    return jnp.pad(a, ((0, rows - r), (0, cols - c)))


# --------------------------------------------------------------------------
# Stage 1: linear1 (K-tiled reduction, H-tiled parallel) + BatchNorm1d + ReLU
# --------------------------------------------------------------------------
def _linear1_bn_relu_kernel(x_ref, w1_ref, gamma_ref, beta_ref, h_ref, acc_ref,
                            *, batch_size, num_pad_rows):
    k = pl.program_id(1)          # reduction axis (innermost)

    @pl.when(k == 0)
    def _():
        acc_ref[...] = jnp.zeros_like(acc_ref)

    # MXU matmul in the native input dtype (bf16-friendly), f32 accumulation.
    acc_ref[...] += jnp.dot(x_ref[...], w1_ref[...],
                            preferred_element_type=jnp.float32)

    @pl.when(k == pl.num_programs(1) - 1)
    def _():
        h = acc_ref[...]
        inv_b = 1.0 / batch_size
        # Mean over the REAL batch rows (padded rows are all-zero -> contribute 0).
        mean = jnp.sum(h, axis=0, keepdims=True) * inv_b
        centered = h - mean
        # Two-pass variance: sum((h - mean)^2) / B.  Zero-padded batch rows
        # would contribute mean^2 each, so mask them out of the statistics.
        if num_pad_rows:
            rows = jax.lax.broadcasted_iota(jnp.int32, centered.shape, 0)
            centered_stats = jnp.where(rows < int(batch_size), centered, 0.0)
        else:
            centered_stats = centered
        var = jnp.sum(centered_stats * centered_stats, axis=0,
                      keepdims=True) * inv_b
        # Fold the BN affine into a per-column scale; beta is the shift.
        scale = gamma_ref[...].astype(jnp.float32) * jax.lax.rsqrt(var + 1e-5)
        h_ref[...] = jnp.maximum(
            centered * scale + beta_ref[...].astype(jnp.float32),
            0.0).astype(h_ref.dtype)


# --------------------------------------------------------------------------
# Stage 2: linear2, M/N-tiled (both "parallel" -> megacore split on v7x)
# --------------------------------------------------------------------------
def _linear2_kernel(h_ref, w2_ref, b2_ref, o_ref):
    out = jnp.dot(h_ref[...], w2_ref[...], preferred_element_type=jnp.float32)
    o_ref[...] = (out + b2_ref[...].astype(jnp.float32)).astype(o_ref.dtype)


def prediction_mlp_pallas(x, w1, b1, gamma, beta, w2, b2, *,
                          block_k=512, block_h=256, block_n=512, block_m=512):
    """x: (B, in_dim); w1: (in_dim, hidden); w2: (hidden, out_dim).
    Biases / BN params are (1, dim) rows.  `b1` is accepted for API parity with
    nn.Linear but is unused: a bias right before BatchNorm is cancelled by the
    mean subtraction, so streaming/adding it is dead work.
    For the small-batch weight-streaming regime callers may raise block_k /
    block_n toward 1024 (fewer, larger weight tiles)."""
    del b1
    B, in_dim = x.shape
    hidden = w1.shape[1]
    out_dim = w2.shape[1]
    dtype = x.dtype

    # Pad the batch to the dtype's sublane packing; if it exceeds block_m,
    # split it into balanced M tiles (minimal padding waste).
    sub = 8 if jnp.dtype(dtype).itemsize >= 4 else 16
    Bp = _round_up(B, sub)
    if Bp > block_m:
        nm = _cdiv(Bp, block_m)
        tm = _round_up(_cdiv(Bp, nm), sub)
        Bp = nm * tm
    else:
        tm = Bp

    # Pad features to 128-lane multiples and to their tile sizes.
    Kp = _round_up(in_dim, 128)
    tk = min(block_k, Kp)
    Kp = _round_up(Kp, tk)

    Hp = _round_up(hidden, 128)
    th = min(block_h, Hp)
    Hp = _round_up(Hp, th)

    Np = _round_up(out_dim, 128)
    tn = min(block_n, Np)
    Np = _round_up(Np, tn)

    x_p = _pad2d(x, Bp, Kp)
    w1_p = _pad2d(w1, Kp, Hp)
    gamma_p = _pad2d(gamma, 1, Hp)   # padded cols: gamma=0 -> output 0 there
    beta_p = _pad2d(beta, 1, Hp)
    w2_p = _pad2d(w2, Hp, Np)
    b2_p = _pad2d(b2, 1, Np)

    # ---- stage 1: (H parallel, K reduction) linear1 + fused BN + ReLU ----
    h = pl.pallas_call(
        functools.partial(_linear1_bn_relu_kernel,
                          batch_size=float(B), num_pad_rows=Bp - B),
        out_shape=jax.ShapeDtypeStruct((Bp, Hp), dtype),
        grid=(Hp // th, Kp // tk),
        in_specs=[
            pl.BlockSpec((Bp, tk), lambda hi, k: (0, k)),
            pl.BlockSpec((tk, th), lambda hi, k: (k, hi)),
            pl.BlockSpec((1, th), lambda hi, k: (0, hi)),
            pl.BlockSpec((1, th), lambda hi, k: (0, hi)),
        ],
        out_specs=pl.BlockSpec((Bp, th), lambda hi, k: (0, hi)),
        scratch_shapes=[pltpu.VMEM((Bp, th), jnp.float32)],
        compiler_params=pltpu.CompilerParams(
            # H tiles are independent (BN stats are per-column) -> megacore;
            # K is the accumulated reduction axis.
            dimension_semantics=("parallel", "arbitrary"),
            # Safe on all chips (v5e default 16 MiB, v6e/v7x 32 MiB); on
            # v5e/v6e with very large batches this can be raised further.
            vmem_limit_bytes=32 * 1024 * 1024,
        ),
    )(x_p, w1_p, gamma_p, beta_p)

    # ---- stage 2: (M, N)-tiled linear2 -> out (Bp, Np) ----
    out_p = pl.pallas_call(
        _linear2_kernel,
        out_shape=jax.ShapeDtypeStruct((Bp, Np), dtype),
        grid=(Bp // tm, Np // tn),
        in_specs=[
            pl.BlockSpec((tm, Hp), lambda i, j: (i, 0)),
            pl.BlockSpec((Hp, tn), lambda i, j: (0, j)),
            pl.BlockSpec((1, tn), lambda i, j: (0, j)),
        ],
        out_specs=pl.BlockSpec((tm, tn), lambda i, j: (i, j)),
        compiler_params=pltpu.CompilerParams(
            dimension_semantics=("parallel", "parallel"),
            vmem_limit_bytes=32 * 1024 * 1024,
        ),
    )(h, w2_p, b2_p)

    return out_p[:B, :out_dim]


def init_params(key, in_dim, hidden_dim, out_dim, dtype=jnp.bfloat16):
    """Deterministic synthetic parameters (shapes follow prediction_MLP.__init__).
    PyTorch Linear weight is (out, in); we store the transpose (in, out)."""
    k1, k2, k3, k4 = jax.random.split(key, 4)
    lim1 = 1.0 / (in_dim ** 0.5)
    lim2 = 1.0 / (hidden_dim ** 0.5)
    w1 = jax.random.uniform(k1, (in_dim, hidden_dim), jnp.float32, -lim1, lim1).astype(dtype)
    b1 = jax.random.uniform(k2, (1, hidden_dim), jnp.float32, -lim1, lim1).astype(dtype)
    w2 = jax.random.uniform(k3, (hidden_dim, out_dim), jnp.float32, -lim2, lim2).astype(dtype)
    b2 = jax.random.uniform(k4, (1, out_dim), jnp.float32, -lim2, lim2).astype(dtype)
    gamma = jnp.ones((1, hidden_dim), dtype)   # BN weight init
    beta = jnp.zeros((1, hidden_dim), dtype)   # BN bias init
    return w1, b1, gamma, beta, w2, b2


def reference(x, w1, b1, gamma, beta, w2, b2):
    f32 = lambda a: a.astype(jnp.float32)
    h = f32(x) @ f32(w1) + f32(b1)
    mean = h.mean(axis=0, keepdims=True)
    var = ((h - mean) ** 2).mean(axis=0, keepdims=True)
    h = (h - mean) / jnp.sqrt(var + 1e-5) * f32(gamma) + f32(beta)
    h = jnp.maximum(h, 0.0)
    return h @ f32(w2) + f32(b2)


if __name__ == "__main__":
    # Small shapes consistent with the module: (B, in_dim) -> (B, out_dim)
    B, in_dim, hidden_dim, out_dim = 8, 32, 64, 128
    dtype = jnp.bfloat16   # MXU-native path; kernel never upcasts matmul operands

    key = jax.random.PRNGKey(0)
    kx, kp = jax.random.split(key)
    x = jax.random.normal(kx, (B, in_dim), jnp.float32).astype(dtype)
    params = init_params(kp, in_dim, hidden_dim, out_dim, dtype)

    out = prediction_mlp_pallas(x, *params)
    out = jax.block_until_ready(out)

    ref = reference(x, *params)
    assert out.shape == (B, out_dim)
    out_f32 = out.astype(jnp.float32)
    max_err = float(jnp.max(jnp.abs(out_f32 - ref)))
    assert jnp.allclose(out_f32, ref, atol=5e-2, rtol=5e-2), (
        f"mismatch vs JAX reference (max abs err {max_err})")

    print("KERNEL_OK")
</pallas_src>

<mosaic_0001>
module attributes {stable_mosaic.version = 11 : i64} {
  func.func @_linear1_bn_relu_kernel(%arg0: i32, %arg1: i32, %arg2: memref<16x128xbf16, #tpu.memory_space<vmem>>, %arg3: memref<128x128xbf16, #tpu.memory_space<vmem>>, %arg4: memref<1x128xbf16, #tpu.memory_space<vmem>>, %arg5: memref<1x128xbf16, #tpu.memory_space<vmem>>, %arg6: memref<16x128xbf16, #tpu.memory_space<vmem>>, %arg7: memref<16x128xf32, #tpu.memory_space<vmem>>) attributes {dimension_semantics = [#tpu.dimension_semantics<parallel>, #tpu.dimension_semantics<arbitrary>], iteration_bounds = array<i64: 1, 1>, scalar_prefetch = 0 : i64, scratch_operands = 1 : i64, tpu.core_type = #tpu.core_type<tc>, window_params = [{transform_indices = @transform_0, window_bounds = array<i64: 16, 128>}, {transform_indices = @transform_1, window_bounds = array<i64: 128, 128>}, {transform_indices = @transform_2, window_bounds = array<i64: 1, 128>}, {transform_indices = @transform_3, window_bounds = array<i64: 1, 128>}, {transform_indices = @transform_4, window_bounds = array<i64: 16, 128>}]} {
    %c0_i32 = arith.constant 0 : i32
    %0 = arith.cmpi eq, %arg1, %c0_i32 : i32
    %1 = arith.extui %0 : i1 to i32
    %c0_i32_0 = arith.constant 0 : i32
    %2 = arith.cmpi ne, %1, %c0_i32_0 : i32
    scf.if %2 {
      %cst_10 = arith.constant 0.000000e+00 : f32
      %12 = vector.broadcast %cst_10 : f32 to vector<16x128xf32>
      %c0_11 = arith.constant 0 : index
      %c0_12 = arith.constant 0 : index
      %13 = vector.load %arg7[%c0_11, %c0_12] : memref<16x128xf32, #tpu.memory_space<vmem>>, vector<16x128xf32>
      tpu.vector_store %arg7[%c0_11, %c0_12], %12 {strides = array<i32>} : memref<16x128xf32, #tpu.memory_space<vmem>>, vector<16x128xf32>,
    } else {
    }
    %c0 = arith.constant 0 : index
    %c0_1 = arith.constant 0 : index
    %3 = vector.load %arg7[%c0, %c0_1] : memref<16x128xf32, #tpu.memory_space<vmem>>, vector<16x128xf32>
    %c0_2 = arith.constant 0 : index
    %c0_3 = arith.constant 0 : index
    %4 = vector.load %arg2[%c0_2, %c0_3] : memref<16x128xbf16, #tpu.memory_space<vmem>>, vector<16x128xbf16>
    %c0_4 = arith.constant 0 : index
    %c0_5 = arith.constant 0 : index
    %5 = vector.load %arg3[%c0_4, %c0_5] : memref<128x128xbf16, #tpu.memory_space<vmem>>, vector<128x128xbf16>
    %cst = arith.constant dense<0.000000e+00> : vector<16x128xf32>
    %6 = tpu.matmul %4, %5, %cst {dimension_numbers = #tpu.dot_dimension_numbers<[1], [0], [0], [1], [0, 0, 1, 1], [], []>} : vector<16x128xbf16>, vector<128x128xbf16>, vector<16x128xf32> -> vector<16x128xf32>
    %7 = arith.addf %3, %6 : vector<16x128xf32>
    %c0_6 = arith.constant 0 : index
    %c0_7 = arith.constant 0 : index
    %8 = vector.load %arg7[%c0_6, %c0_7] : memref<16x128xf32, #tpu.memory_space<vmem>>, vector<16x128xf32>
    tpu.vector_store %arg7[%c0_6, %c0_7], %7 {strides = array<i32>} : memref<16x128xf32, #tpu.memory_space<vmem>>, vector<16x128xf32>,
    %c0_i32_8 = arith.constant 0 : i32
    %9 = arith.cmpi eq, %arg1, %c0_i32_8 : i32
    %10 = arith.extui %9 : i1 to i32
    %c0_i32_9 = arith.constant 0 : i32
    %11 = arith.cmpi ne, %10, %c0_i32_9 : i32
    scf.if %11 {
      %c0_10 = arith.constant 0 : index
      %c0_11 = arith.constant 0 : index
      %12 = vector.load %arg7[%c0_10, %c0_11] : memref<16x128xf32, #tpu.memory_space<vmem>>, vector<16x128xf32>
      %cst_12 = arith.constant dense<0.000000e+00> : vector<128xf32>
      %13 = vector.multi_reduction <add>, %12, %cst_12 [0] : vector<16x128xf32> to vector<128xf32>
      %14 = vector.shape_cast %13 : vector<128xf32> to vector<1x128xf32>
      %cst_13 = arith.constant 1.250000e-01 : f32
      %15 = vector.broadcast %cst_13 : f32 to vector<1x128xf32>
      %16 = arith.mulf %14, %15 : vector<1x128xf32>
      %17 = vector.broadcast %16 : vector<1x128xf32> to vector<16x128xf32>
      %18 = arith.subf %12, %17 : vector<16x128xf32>
      %19 = tpu.iota {dimensions = array<i32: 0>} : vector<16x128xi32>
      %c8_i32 = arith.constant 8 : i32
      %20 = vector.broadcast %c8_i32 : i32 to vector<16x128xi32>
      %21 = arith.cmpi slt, %19, %20 : vector<16x128xi32>
      %cst_14 = arith.constant 0.000000e+00 : f32
      %22 = vector.broadcast %cst_14 : f32 to vector<16x128xf32>
      %23 = arith.select %21, %18, %22 : vector<16x128xi1>, vector<16x128xf32>
      %24 = arith.mulf %23, %23 : vector<16x128xf32>
      %cst_15 = arith.constant dense<0.000000e+00> : vector<128xf32>
      %25 = vector.multi_reduction <add>, %24, %cst_15 [0] : vector<16x128xf32> to vector<128xf32>
      %26 = vector.shape_cast %25 : vector<128xf32> to vector<1x128xf32>
      %cst_16 = arith.constant 1.250000e-01 : f32
      %27 = vector.broadcast %cst_16 : f32 to vector<1x128xf32>
      %28 = arith.mulf %26, %27 : vector<1x128xf32>
      %c0_17 = arith.constant 0 : index
      %c0_18 = arith.constant 0 : index
      %29 = vector.load %arg4[%c0_17, %c0_18] : memref<1x128xbf16, #tpu.memory_space<vmem>>, vector<1x128xbf16>
      %30 = arith.extf %29 : vector<1x128xbf16> to vector<1x128xf32>
      %cst_19 = arith.constant 9.99999974E-6 : f32
      %31 = vector.broadcast %cst_19 : f32 to vector<1x128xf32>
      %32 = arith.addf %28, %31 : vector<1x128xf32>
      %33 = math.rsqrt %32 : vector<1x128xf32>
      %34 = arith.mulf %30, %33 : vector<1x128xf32>
      %35 = vector.broadcast %34 : vector<1x128xf32> to vector<16x128xf32>
      %36 = arith.mulf %18, %35 : vector<16x128xf32>
      %c0_20 = arith.constant 0 : index
      %c0_21 = arith.constant 0 : index
      %37 = vector.load %arg5[%c0_20, %c0_21] : memref<1x128xbf16, #tpu.memory_space<vmem>>, vector<1x128xbf16>
      %38 = arith.extf %37 : vector<1x128xbf16> to vector<1x128xf32>
      %39 = vector.broadcast %38 : vector<1x128xf32> to vector<16x128xf32>
      %40 = arith.addf %36, %39 : vector<16x128xf32>
      %cst_22 = arith.constant 0.000000e+00 : f32
      %41 = vector.broadcast %cst_22 : f32 to vector<16x128xf32>
      %42 = arith.maximumf %40, %41 : vector<16x128xf32>
      %43 = arith.truncf %42 : vector<16x128xf32> to vector<16x128xbf16>
      %c0_23 = arith.constant 0 : index
      %c0_24 = arith.constant 0 : index
      %44 = vector.load %arg6[%c0_23, %c0_24] : memref<16x128xbf16, #tpu.memory_space<vmem>>, vector<16x128xbf16>
      tpu.vector_store %arg6[%c0_23, %c0_24], %43 {strides = array<i32>} : memref<16x128xbf16, #tpu.memory_space<vmem>>, vector<16x128xbf16>,
    } else {
    }
    return
  }
  func.func @transform_0(%arg0: i32, %arg1: i32) -> (i32, i32) {
    %c0_i32 = arith.constant 0 : i32
    %c0_i32_0 = arith.constant 0 : i32
    return %c0_i32, %arg1 : i32, i32
  }
  func.func @transform_1(%arg0: i32, %arg1: i32) -> (i32, i32) {
    %c0_i32 = arith.constant 0 : i32
    return %arg1, %arg0 : i32, i32
  }
  func.func @transform_2(%arg0: i32, %arg1: i32) -> (i32, i32) {
    %c0_i32 = arith.constant 0 : i32
    %c0_i32_0 = arith.constant 0 : i32
    return %c0_i32, %arg0 : i32, i32
  }
  func.func @transform_3(%arg0: i32, %arg1: i32) -> (i32, i32) {
    %c0_i32 = arith.constant 0 : i32
    %c0_i32_0 = arith.constant 0 : i32
    return %c0_i32, %arg0 : i32, i32
  }
  func.func @transform_4(%arg0: i32, %arg1: i32) -> (i32, i32) {
    %c0_i32 = arith.constant 0 : i32
    %c0_i32_0 = arith.constant 0 : i32
    return %c0_i32, %arg0 : i32, i32
  }
}

</mosaic_0001>

<llo_original>
// kernel: tpu_custom_call.1
$region0: #{tpu_custom_call.1}
  #allocation0 [shape = 'u32[]', space=smem, size = 0x4, offset = 0x4, fixed_abs, tag = 'smem constant byte address 0x4 - core index']
  #allocation1 [shape = 'u32[144,128]{1,0:T(1,128)}', space=vmem, size = 0x12000, scoped, tag = 'internal scratch']
  #allocation2 [shape = 'f32[16,128]{1,0:T(8,128)}', space=vmem, size = 0x2000, scoped, tag = 'scratch operand']
  %s0 = inlined_call_operand.hbm [shape: bf16[16,128], index: 0, kind: input, shape index: {}]
  %s1 = inlined_call_operand.hbm [shape: bf16[128,128], index: 1, kind: input, shape index: {}]
  %s2 = inlined_call_operand.vmem [shape: bf16[1,128], index: 2, kind: input, shape index: {}]
  %s3 = inlined_call_operand.vmem [shape: bf16[1,128], index: 3, kind: input, shape index: {}]
  %s4 = inlined_call_operand.hbm [shape: bf16[16,128], index: 4, kind: output, shape index: {}]
  %s5 = sld [smem:[#allocation0]]
  $region42: #{tpu_custom_call.1} parent=0
    _
  %s7 = ssub.s32 1, %s5
  %s8 = scalar_select 0, %s7, %s5
  $region1: #{tpu_custom_call.1} parent=0
    #allocation3 [shape = 'u8[4096]{0}', space=vmem, size = 0x1000, scoped, tag = 'input window, operand 0, single buffered']
    #allocation4 [shape = 's32[1]{0}', space=sflag, size = 0x4, scoped, tag = 'scoped memory for tpu_custom_call.1']
    #allocation5 [shape = 's32[1]{0}', space=sflag, size = 0x4, scoped, tag = 'scoped memory for tpu_custom_call.1']
    #allocation6 [shape = 'u8[32768]{0}', space=vmem, size = 0x8000, scoped, tag = 'input window, operand 1, single buffered']
    #allocation7 [shape = 's32[1]{0}', space=sflag, size = 0x4, scoped, tag = 'scoped memory for tpu_custom_call.1']
    #allocation8 [shape = 'u8[4096]{0}', space=vmem, size = 0x1000, scoped, tag = 'output window, operand 0, single buffered']
    %9 = vsyncpa [#allocation4], 0
    %10 = vsyncpa [#allocation7], 0
    %11 = vsyncpa [#allocation5], 0
    // Predicated region
    $region2: #{tpu_custom_call.1} parent=1 // pred_check
      _
    $region3: #{tpu_custom_call.1} parent=1 // pred_check_branch
      %13 = sbr.rel (0) target = $region5
    $region4: #{tpu_custom_call.1} parent=1 // pred_region
      %s15 = ssub.s32 128, 128
      %16 = vsyncadd [#allocation4], %s15
      %s17 = sshll.u32 [#allocation3], 4
      %s18 = int_to_ptr.vmem [resolvable:$true] %s17
      %23 = dma.hbm_to_vmem [thread:$0]  %s0, 128, %s18, [#allocation4], 64, 64, 4
    $region5: #{tpu_custom_call.1} parent=1 // pred_fallthru
      _
    // Predicated region
    $region6: #{tpu_custom_call.1} parent=1 // pred_check
      _
    $region7: #{tpu_custom_call.1} parent=1 // pred_check_branch
      %25 = sbr.rel (0) target = $region9
    $region8: #{tpu_custom_call.1} parent=1 // pred_region
      %s27 = ssub.s32 1024, 1024
      %28 = vsyncadd [#allocation7], %s27
      %s29 = sshll.u32 [#allocation6], 4
      %s30 = int_to_ptr.vmem [resolvable:$true] %s29
      %35 = dma.hbm_to_vmem [thread:$0]  %s1, 1024, %s30, [#allocation7], 64, 64, 4
    $region9: #{tpu_custom_call.1} parent=1 // pred_fallthru
      _
    // Predicated region
    $region10: #{tpu_custom_call.1} parent=1 // pred_check
      _
    $region11: #{tpu_custom_call.1} parent=1 // pred_check_branch
      %37 = sbr.rel (0) target = $region13
    $region12: #{tpu_custom_call.1} parent=1 // pred_region
      _
    $region13: #{tpu_custom_call.1} parent=1 // pred_fallthru
      _
    // Predicated region
    $region14: #{tpu_custom_call.1} parent=1 // pred_check
      _
    $region15: #{tpu_custom_call.1} parent=1 // pred_check_branch
      %39 = sbr.rel (0) target = $region17
    $region16: #{tpu_custom_call.1} parent=1 // pred_region
      _
    $region17: #{tpu_custom_call.1} parent=1 // pred_fallthru
      _
    // Predicated region
    $region18: #{tpu_custom_call.1} parent=1 // pred_check
      _
    $region19: #{tpu_custom_call.1} parent=1 // pred_check_branch
      %41 = sbr.rel (0) target = $region21
    $region20: #{tpu_custom_call.1} parent=1 // pred_region
      %42 = dma.done [#allocation4], 128
    $region21: #{tpu_custom_call.1} parent=1 // pred_fallthru
      _
    // Predicated region
    $region22: #{tpu_custom_call.1} parent=1 // pred_check
      _
    $region23: #{tpu_custom_call.1} parent=1 // pred_check_branch
      %44 = sbr.rel (0) target = $region25
    $region24: #{tpu_custom_call.1} parent=1 // pred_region
      %45 = dma.done [#allocation7], 1024
    $region25: #{tpu_custom_call.1} parent=1 // pred_fallthru
      _
    %p47 = scmp.eq.s32.totalorder 0, 0
    // Predicated region
    $region26: #{tpu_custom_call.1} parent=1 // pred_check
      %p48 = pneg %p47
    $region27: #{tpu_custom_call.1} parent=1 // pred_check_branch
      %50 = sbr.rel (%p48) target = $region29
    $region28: #{tpu_custom_call.1} parent=1 // pred_region
      %51 = vst [vmem:[#allocation2] sm:$0xff] 0.0
      %52 = vst [vmem:[#allocation2 + $0x8] sm:$0xff] 0.0
    $region29: #{tpu_custom_call.1} parent=1 // pred_fallthru
      _
    %v53 = vld [vmem:[#allocation2] sm:$0xff]
    %v54 = vld [vmem:[#allocation2 + $0x8] sm:$0xff]
    %v55 = vld [vmem:[#allocation3] sm:$0xf]
    %v56 = vld [vmem:[#allocation3 + $0x4] sm:$0xf]
    %v57 = vld [vmem:[#allocation6] sm:$0xf]
    %v58 = vld [vmem:[#allocation6 + $0x4] sm:$0xf]
    %v59 = vld [vmem:[#allocation6 + $0x8] sm:$0xf]
    %v60 = vld [vmem:[#allocation6 + $0xc] sm:$0xf]
    %v61 = vld [vmem:[#allocation6 + $0x10] sm:$0xf]
    %v62 = vld [vmem:[#allocation6 + $0x14] sm:$0xf]
    %v63 = vld [vmem:[#allocation6 + $0x18] sm:$0xf]
    %v64 = vld [vmem:[#allocation6 + $0x1c] sm:$0xf]
    %v65 = vld [vmem:[#allocation6 + $0x20] sm:$0xf]
    %v66 = vld [vmem:[#allocation6 + $0x24] sm:$0xf]
    %v67 = vld [vmem:[#allocation6 + $0x28] sm:$0xf]
    %v68 = vld [vmem:[#allocation6 + $0x2c] sm:$0xf]
    %v69 = vld [vmem:[#allocation6 + $0x30] sm:$0xf]
    %v70 = vld [vmem:[#allocation6 + $0x34] sm:$0xf]
    %v71 = vld [vmem:[#allocation6 + $0x38] sm:$0xf]
    %v72 = vld [vmem:[#allocation6 + $0x3c] sm:$0xf]
    %v75 = vunpack.c.l.b16 %v55
    %v76 = vunpack.c.l.b16 %v56
    %v77 = vpack.c.b16 %v76, %v75
    %v95 = vunpack.c.l.b16 %v57
    %v96 = vunpack.c.l.b16 %v58
    %v97 = vunpack.c.l.b16 %v59
    %v98 = vunpack.c.l.b16 %v60
    %v99 = vunpack.c.l.b16 %v61
    %v100 = vunpack.c.l.b16 %v62
    %v101 = vunpack.c.l.b16 %v63
    %v102 = vunpack.c.l.b16 %v64
    %v103 = vunpack.c.l.b16 %v65
    %v104 = vunpack.c.l.b16 %v66
    %v105 = vunpack.c.l.b16 %v67
    %v106 = vunpack.c.l.b16 %v68
    %v107 = vunpack.c.l.b16 %v69
    %v108 = vunpack.c.l.b16 %v70
    %v109 = vunpack.c.l.b16 %v71
    %v110 = vunpack.c.l.b16 %v72
    %v111 = vpack.c.b16 %v96, %v95
    %v112 = vpack.c.b16 %v98, %v97
    %v113 = vpack.c.b16 %v100, %v99
    %v114 = vpack.c.b16 %v102, %v101
    %v115 = vpack.c.b16 %v104, %v103
    %v116 = vpack.c.b16 %v106, %v105
    %v117 = vpack.c.b16 %v108, %v107
    %v118 = vpack.c.b16 %v110, %v109
    %127 = vmatprep.subr.bf16.mxu0 0
    %128 = vmatpush1.bf16.msra.mxu0 %v111
    %129 = vmatprep.subr.bf16.mxu0 0
    %130 = vmatpush1.bf16.msra.mxu0 %v112
    %131 = vmatprep.subr.bf16.mxu0 0
    %132 = vmatpush1.bf16.msra.mxu0 %v113
    %133 = vmatprep.subr.bf16.mxu0 0
    %134 = vmatpush1.bf16.msra.mxu0 %v114
    %135 = vmatprep.subr.bf16.mxu0 0
    %136 = vmatpush1.bf16.msra.mxu0 %v115
    %137 = vmatprep.subr.bf16.mxu0 0
    %138 = vmatpush1.bf16.msra.mxu0 %v116
    %139 = vmatprep.subr.bf16.mxu0 0
    %140 = vmatpush1.bf16.msra.mxu0 %v117
    %141 = vmatprep.subr.bf16.mxu0 0
    %142 = vmatpush1.bf16.msra.mxu0 %v118
    %143 = vmatprep.subr.bf16.mxu0 0
    %144 = vmatpush1.bf16.msra.mxu0 0
    %145 = vmatprep.subr.bf16.mxu0 0
    %146 = vmatpush1.bf16.msra.mxu0 0
    %147 = vmatprep.subr.bf16.mxu0 0
    %148 = vmatpush1.bf16.msra.mxu0 0
    %149 = vmatprep.subr.bf16.mxu0 0
    %150 = vmatpush1.bf16.msra.mxu0 0
    %151 = vmatprep.subr.bf16.mxu0 0
    %152 = vmatpush1.bf16.msra.mxu0 0
    %153 = vmatprep.subr.bf16.mxu0 0
    %154 = vmatpush1.bf16.msra.mxu0 0
    %155 = vmatprep.subr.bf16.mxu0 0
    %156 = vmatpush1.bf16.msra.mxu0 0
    %157 = vmatprep.subr.bf16.mxu0 0
    %158 = vmatpush1.bf16.msra.mxu0 0
    %159 = vmatprep.mubr.bf16.mxu0 0
    %160 = vmatmul.mubr.bf16.gmra.mrb[0].mxu0 %v77
    %v161 = vpop.f32.mrb[0].mxu0
    %v162 = vadd.f32 0.0, %v161
    %v163 = vpop.f32.mrb[0].mxu0
    %v164 = vpop.f32.mrb[0].mxu0
    %v165 = vadd.f32 0.0, %v164
    %v166 = vpop.f32.mrb[0].mxu0
    %167 = vdwg.mxu0
    %v168 = vadd.f32 %v53, %v162
    %v169 = vadd.f32 %v54, %v165
    %170 = vst [vmem:[#allocation2] sm:$0xff] %v168
    %171 = vst [vmem:[#allocation2 + $0x8] sm:$0xff] %v169
    // Predicated region
    $region30: #{tpu_custom_call.1} parent=1 // pred_check
      %p172 = pneg %p47
    $region31: #{tpu_custom_call.1} parent=1 // pred_check_branch
      %174 = sbr.rel (%p172) target = $region33
    $region32: #{tpu_custom_call.1} parent=1 // pred_region
      %v175 = vld [vmem:[#allocation2] sm:$0xff]
      %v176 = vld [vmem:[#allocation2 + $0x8] sm:$0xff]
      %v177 = vadd.f32 %v175, %v176
      %v178 = vrot.slane %v177, 4
      %v179 = vadd.f32 %v177, %v178
      %v180 = vrot.slane %v179, 2
      %v181 = vadd.f32 %v179, %v180
      %v182 = vrot.slane %v181, 1
      %v183 = vadd.f32 %v181, %v182
      %v184 = vmul.f32 %v183, 0.125
      %v185 = vsub.f32 %v175, %v184
      %v186 = vsub.f32 %v176, %v184
      %v187 = vlaneseq
      %v188 = vshrl.u32 %v187, 7
      %v189 = vadd.s32 %v188, 8
      %vm190 = vcmp.lt.s32.totalorder %v188, 8
      %vm191 = vcmp.lt.s32.totalorder %v189, 8
      %v192 = vsel %vm190, %v185, 0.0
      %v193 = vsel %vm191, %v186, 0.0
      %v194 = vmul.f32 %v192, %v192
      %v195 = vmul.f32 %v193, %v193
      %v196 = vadd.f32 %v194, %v195
      %v197 = vrot.slane %v196, 4
      %v198 = vadd.f32 %v196, %v197
      %v199 = vrot.slane %v198, 2
      %v200 = vadd.f32 %v198, %v199
      %v201 = vrot.slane %v200, 1
      %v202 = vadd.f32 %v200, %v201
      %v203 = vmul.f32 %v202, 0.125
      %v204 = vld [vmem:[%s2] sm:$0x1]
      %v205 = vunpack.c.l.bf16 %v204
      %v206 = vadd.f32 %v203, 1e-05
      %v207 = vrsqrt.pop %v206
      %v208 = vmul.f32 %v205, %v207
      %v209 = vlaneseq
      %v210 = vshrl.u32 %v209, 7
      %v211 = vsub.s32 0, %v210
      %v212 = vrot.slane %v208, %v211
      %v213 = vmul.f32 %v185, %v212
      %v214 = vmul.f32 %v186, %v212
      %v215 = vld [vmem:[%s3] sm:$0x1]
      %v216 = vunpack.c.l.bf16 %v215
      %v217 = vlaneseq
      %v218 = vshrl.u32 %v217, 7
      %v219 = vsub.s32 0, %v218
      %v220 = vrot.slane %v216, %v219
      %v221 = vadd.f32 %v213, %v220
      %v222 = vadd.f32 %v214, %v220
      %v223 = vmax.f32 %v221, 0.0
      %v224 = vmax.f32 %v222, 0.0
      %v225 = vpack.c.bf16 %v224, %v223
      %v227 = vunpack.c.l.b16 %v225
      %v228 = vunpack.c.h.b16 %v225
      %v229 = vpack.c.b16 %v227, %v227
      %v230 = vpack.c.b16 %v228, %v228
      %233 = vst [vmem:[#allocation8] sm:$0xf] %v229
      %234 = vst [vmem:[#allocation8 + $0x4] sm:$0xf] %v230
    $region33: #{tpu_custom_call.1} parent=1 // pred_fallthru
      _
    // Predicated region
    $region34: #{tpu_custom_call.1} parent=1 // pred_check
      _
    $region35: #{tpu_custom_call.1} parent=1 // pred_check_branch
      %236 = sbr.rel (0) target = $region37
    $region36: #{tpu_custom_call.1} parent=1 // pred_region
      %s238 = ssub.s32 128, 128
      %239 = vsyncadd [#allocation5], %s238
      %s240 = sshll.u32 [#allocation8], 4
      %s241 = int_to_ptr.vmem [resolvable:$true] %s240
      %246 = dma.vmem_to_hbm [thread:$0]  %s241, 128, %s4, [#allocation5], 64, 64, 4
    $region37: #{tpu_custom_call.1} parent=1 // pred_fallthru
      _
    // Predicated region
    $region38: #{tpu_custom_call.1} parent=1 // pred_check
      _
    $region39: #{tpu_custom_call.1} parent=1 // pred_check_branch
      %248 = sbr.rel (0) target = $region41
    $region40: #{tpu_custom_call.1} parent=1 // pred_region
      %249 = dma.done [#allocation5], 128
    $region41: #{tpu_custom_call.1} parent=1 // pred_fallthru
      _
    %250 = vsyncpa [#allocation4], 1
    %251 = vsyncpa [#allocation7], 1
    %252 = vsyncpa [#allocation5], 1

</llo_original>
